<compile_context>
chip_gen: v6e
topology: v6e:2x2x1
jax: 0.10.0
libtpu: 0.0.40
codegen_flags: <defaults>
</compile_context>

<pallas_src>
import functools

import jax
import jax.numpy as jnp
from jax.experimental import pallas as pl
from jax.experimental.pallas import tpu as pltpu


LAYER_DIMS = [(6, 128), (128, 64), (64, 32), (32, 3)]
K0_PAD = 8      # first-layer input features padded 6 -> 8 (sublane multiple)
D_PAD = 128     # all hidden/output widths padded to one lane-dense slab


def _round_up(n, m):
    return ((n + m - 1) // m) * m


def dino_mlp_kernel(x_ref, w_ref, b_ref, o_ref):
    # x_ref: (tile_b, 8)   bf16  — batch tile, features zero-padded 6 -> 8
    # w_ref: (4, 128, 128) bf16  — zero-padded weights, VMEM-resident
    # b_ref: (4, 128)      f32   — zero-padded biases
    # o_ref: (tile_b, 128) f32   — lane-dense output slab (cols 3..127 == 0)
    b = b_ref[...]  # tiny (4, 128) f32 load

    # Layer 1: (tile_b, 8) @ (8, 128) -> f32; bias + ReLU in f32.
    h = jnp.dot(x_ref[...], w_ref[0, :K0_PAD, :],
                preferred_element_type=jnp.float32)
    h = jnp.maximum(h + b[0:1, :], 0.0)

    # Layer 2: (tile_b, 128) @ (128, 128)
    h = jnp.dot(h.astype(jnp.bfloat16), w_ref[1],
                preferred_element_type=jnp.float32)
    h = jnp.maximum(h + b[1:2, :], 0.0)

    # Layer 3
    h = jnp.dot(h.astype(jnp.bfloat16), w_ref[2],
                preferred_element_type=jnp.float32)
    h = jnp.maximum(h + b[2:3, :], 0.0)

    # Layer 4 (no ReLU)
    h = jnp.dot(h.astype(jnp.bfloat16), w_ref[3],
                preferred_element_type=jnp.float32)
    o_ref[...] = h + b[3:4, :]


@functools.partial(jax.jit, static_argnames=("tile_b",))
def dino_forward(x, w_packed, b_packed, *, tile_b=512):
    """x: (B, 6) float32. w_packed: (4,128,128) bf16. b_packed: (4,128) f32."""
    B = x.shape[0]
    tile_b = min(tile_b, _round_up(B, 8))   # small batches: single small tile
    B_pad = _round_up(B, tile_b)

    # Zero-pad batch to a tile multiple and features 6 -> 8; cast to bf16.
    x_pad = jnp.zeros((B_pad, K0_PAD), jnp.bfloat16)
    x_pad = x_pad.at[:B, :6].set(x.astype(jnp.bfloat16))

    grid = (B_pad // tile_b,)
    flops = 2 * B_pad * sum(fi * fo for fi, fo in LAYER_DIMS)
    bytes_accessed = (B_pad * K0_PAD * 2 + w_packed.size * 2
                      + b_packed.size * 4 + B_pad * D_PAD * 4)

    out = pl.pallas_call(
        dino_mlp_kernel,
        out_shape=jax.ShapeDtypeStruct((B_pad, D_PAD), jnp.float32),
        grid=grid,
        in_specs=[
            pl.BlockSpec((tile_b, K0_PAD), lambda i: (i, 0)),       # x tile
            pl.BlockSpec((4, D_PAD, D_PAD), lambda i: (0, 0, 0)),   # weights
            pl.BlockSpec((4, D_PAD), lambda i: (0, 0)),             # biases
        ],
        out_specs=pl.BlockSpec((tile_b, D_PAD), lambda i: (i, 0)),
        compiler_params=pltpu.CompilerParams(
            dimension_semantics=("parallel",)),
        cost_estimate=pl.CostEstimate(
            flops=flops, transcendentals=0, bytes_accessed=bytes_accessed),
    )(x_pad, w_packed, b_packed)

    return out[:B, :3]


def init_params(key):
    """PyTorch nn.Linear-style init (uniform +/- 1/sqrt(fan_in)).
    Weights stored as (in_features, out_features); biases as (out,)."""
    params = {}
    for i, (fan_in, fan_out) in enumerate(LAYER_DIMS, start=1):
        key, kw, kb = jax.random.split(key, 3)
        bound = 1.0 / jnp.sqrt(float(fan_in))
        params[f"w{i}"] = jax.random.uniform(
            kw, (fan_in, fan_out), jnp.float32, -bound, bound)
        params[f"b{i}"] = jax.random.uniform(
            kb, (fan_out,), jnp.float32, -bound, bound)
    return params


def pack_params(params):
    """Zero-pad every layer into MXU-native 128x128 slabs: one bf16 weight
    buffer and one f32 bias buffer."""
    w_packed = jnp.zeros((4, D_PAD, D_PAD), jnp.float32)
    b_packed = jnp.zeros((4, D_PAD), jnp.float32)
    for i, (fi, fo) in enumerate(LAYER_DIMS):
        w_packed = w_packed.at[i, :fi, :fo].set(params[f"w{i + 1}"])
        b_packed = b_packed.at[i, :fo].set(params[f"b{i + 1}"])
    return w_packed.astype(jnp.bfloat16), b_packed


def reference_forward(x, params):
    """Pure-JAX reference mirroring the kernel's numerics: bf16-rounded matmul
    inputs, f32 accumulation, f32 bias/ReLU."""
    h = x.astype(jnp.bfloat16).astype(jnp.float32)
    for i in range(1, 5):
        w = params[f"w{i}"].astype(jnp.bfloat16).astype(jnp.float32)
        h = jnp.dot(h, w, preferred_element_type=jnp.float32) + params[f"b{i}"]
        if i < 4:
            h = jnp.maximum(h, 0.0).astype(jnp.bfloat16).astype(jnp.float32)
    return h


if __name__ == "__main__":
    key = jax.random.PRNGKey(0)
    k_x, k_p = jax.random.split(key)
    B = 8
    x = jax.random.normal(k_x, (B, 6), jnp.float32)
    params = init_params(k_p)
    w_packed, b_packed = pack_params(params)

    out = dino_forward(x, w_packed, b_packed)
    out = jax.block_until_ready(out)

    ref = reference_forward(x, params)
    assert out.shape == (B, 3), out.shape
    err = float(jnp.max(jnp.abs(out - ref)))
    assert err < 2e-3, err
    print("KERNEL_OK")
</pallas_src>

<mosaic_0001>
module attributes {stable_mosaic.version = 11 : i64} {
  func.func @dino_mlp_kernel(%arg0: i32, %arg1: memref<8x8xbf16, #tpu.memory_space<vmem>>, %arg2: memref<4x128x128xbf16, #tpu.memory_space<vmem>>, %arg3: memref<4x128xf32, #tpu.memory_space<vmem>>, %arg4: memref<8x128xf32, #tpu.memory_space<vmem>>) attributes {dimension_semantics = [#tpu.dimension_semantics<parallel>], iteration_bounds = array<i64: 1>, scalar_prefetch = 0 : i64, scratch_operands = 0 : i64, tpu.core_type = #tpu.core_type<tc>, window_params = [{transform_indices = @transform_0, window_bounds = array<i64: 8, 8>}, {pipeline_mode = #tpu.pipeline_mode<synchronous>, transform_indices = @transform_1, window_bounds = array<i64: 4, 128, 128>}, {pipeline_mode = #tpu.pipeline_mode<synchronous>, transform_indices = @transform_2, window_bounds = array<i64: 4, 128>}, {transform_indices = @transform_3, window_bounds = array<i64: 8, 128>}]} {
    %c0 = arith.constant 0 : index
    %c0_0 = arith.constant 0 : index
    %0 = vector.load %arg3[%c0, %c0_0] : memref<4x128xf32, #tpu.memory_space<vmem>>, vector<4x128xf32>
    %c0_1 = arith.constant 0 : index
    %c0_2 = arith.constant 0 : index
    %1 = vector.load %arg1[%c0_1, %c0_2] : memref<8x8xbf16, #tpu.memory_space<vmem>>, vector<8x8xbf16>
    %c0_3 = arith.constant 0 : index
    %c0_4 = arith.constant 0 : index
    %c0_5 = arith.constant 0 : index
    %2 = vector.load %arg2[%c0_3, %c0_4, %c0_5] : memref<4x128x128xbf16, #tpu.memory_space<vmem>>, vector<1x8x128xbf16>
    %3 = vector.shape_cast %2 : vector<1x8x128xbf16> to vector<8x128xbf16>
    %cst = arith.constant dense<0.000000e+00> : vector<8x128xf32>
    %4 = tpu.matmul %1, %3, %cst {dimension_numbers = #tpu.dot_dimension_numbers<[1], [0], [0], [1], [0, 0, 1, 1], [], []>} : vector<8x8xbf16>, vector<8x128xbf16>, vector<8x128xf32> -> vector<8x128xf32>
    %5 = vector.extract_strided_slice %0 {offsets = [0, 0], sizes = [1, 128], strides = [1, 1]} : vector<4x128xf32> to vector<1x128xf32>
    %6 = vector.broadcast %5 : vector<1x128xf32> to vector<8x128xf32>
    %7 = arith.addf %4, %6 : vector<8x128xf32>
    %cst_6 = arith.constant 0.000000e+00 : f32
    %8 = vector.broadcast %cst_6 : f32 to vector<8x128xf32>
    %9 = arith.maximumf %7, %8 : vector<8x128xf32>
    %10 = arith.truncf %9 : vector<8x128xf32> to vector<8x128xbf16>
    %c1 = arith.constant 1 : index
    %c0_7 = arith.constant 0 : index
    %c0_8 = arith.constant 0 : index
    %11 = vector.load %arg2[%c1, %c0_7, %c0_8] : memref<4x128x128xbf16, #tpu.memory_space<vmem>>, vector<1x128x128xbf16>
    %12 = vector.shape_cast %11 : vector<1x128x128xbf16> to vector<128x128xbf16>
    %cst_9 = arith.constant dense<0.000000e+00> : vector<8x128xf32>
    %13 = tpu.matmul %10, %12, %cst_9 {dimension_numbers = #tpu.dot_dimension_numbers<[1], [0], [0], [1], [0, 0, 1, 1], [], []>} : vector<8x128xbf16>, vector<128x128xbf16>, vector<8x128xf32> -> vector<8x128xf32>
    %14 = vector.extract_strided_slice %0 {offsets = [1, 0], sizes = [1, 128], strides = [1, 1]} : vector<4x128xf32> to vector<1x128xf32>
    %15 = vector.broadcast %14 : vector<1x128xf32> to vector<8x128xf32>
    %16 = arith.addf %13, %15 : vector<8x128xf32>
    %cst_10 = arith.constant 0.000000e+00 : f32
    %17 = vector.broadcast %cst_10 : f32 to vector<8x128xf32>
    %18 = arith.maximumf %16, %17 : vector<8x128xf32>
    %19 = arith.truncf %18 : vector<8x128xf32> to vector<8x128xbf16>
    %c2 = arith.constant 2 : index
    %c0_11 = arith.constant 0 : index
    %c0_12 = arith.constant 0 : index
    %20 = vector.load %arg2[%c2, %c0_11, %c0_12] : memref<4x128x128xbf16, #tpu.memory_space<vmem>>, vector<1x128x128xbf16>
    %21 = vector.shape_cast %20 : vector<1x128x128xbf16> to vector<128x128xbf16>
    %cst_13 = arith.constant dense<0.000000e+00> : vector<8x128xf32>
    %22 = tpu.matmul %19, %21, %cst_13 {dimension_numbers = #tpu.dot_dimension_numbers<[1], [0], [0], [1], [0, 0, 1, 1], [], []>} : vector<8x128xbf16>, vector<128x128xbf16>, vector<8x128xf32> -> vector<8x128xf32>
    %23 = vector.extract_strided_slice %0 {offsets = [2, 0], sizes = [1, 128], strides = [1, 1]} : vector<4x128xf32> to vector<1x128xf32>
    %24 = vector.broadcast %23 : vector<1x128xf32> to vector<8x128xf32>
    %25 = arith.addf %22, %24 : vector<8x128xf32>
    %cst_14 = arith.constant 0.000000e+00 : f32
    %26 = vector.broadcast %cst_14 : f32 to vector<8x128xf32>
    %27 = arith.maximumf %25, %26 : vector<8x128xf32>
    %28 = arith.truncf %27 : vector<8x128xf32> to vector<8x128xbf16>
    %c3 = arith.constant 3 : index
    %c0_15 = arith.constant 0 : index
    %c0_16 = arith.constant 0 : index
    %29 = vector.load %arg2[%c3, %c0_15, %c0_16] : memref<4x128x128xbf16, #tpu.memory_space<vmem>>, vector<1x128x128xbf16>
    %30 = vector.shape_cast %29 : vector<1x128x128xbf16> to vector<128x128xbf16>
    %cst_17 = arith.constant dense<0.000000e+00> : vector<8x128xf32>
    %31 = tpu.matmul %28, %30, %cst_17 {dimension_numbers = #tpu.dot_dimension_numbers<[1], [0], [0], [1], [0, 0, 1, 1], [], []>} : vector<8x128xbf16>, vector<128x128xbf16>, vector<8x128xf32> -> vector<8x128xf32>
    %32 = vector.extract_strided_slice %0 {offsets = [3, 0], sizes = [1, 128], strides = [1, 1]} : vector<4x128xf32> to vector<1x128xf32>
    %33 = vector.broadcast %32 : vector<1x128xf32> to vector<8x128xf32>
    %34 = arith.addf %31, %33 : vector<8x128xf32>
    %c0_18 = arith.constant 0 : index
    %c0_19 = arith.constant 0 : index
    %35 = vector.load %arg4[%c0_18, %c0_19] : memref<8x128xf32, #tpu.memory_space<vmem>>, vector<8x128xf32>
    tpu.vector_store %arg4[%c0_18, %c0_19], %34 {strides = array<i32>} : memref<8x128xf32, #tpu.memory_space<vmem>>, vector<8x128xf32>,
    return
  }
  func.func @transform_0(%arg0: i32) -> (i32, i32) {
    %c0_i32 = arith.constant 0 : i32
    %c0_i32_0 = arith.constant 0 : i32
    return %arg0, %c0_i32 : i32, i32
  }
  func.func @transform_1(%arg0: i32) -> (i32, i32, i32) {
    %c0_i32 = arith.constant 0 : i32
    %c0_i32_0 = arith.constant 0 : i32
    %c0_i32_1 = arith.constant 0 : i32
    %c0_i32_2 = arith.constant 0 : i32
    return %c0_i32, %c0_i32_0, %c0_i32_1 : i32, i32, i32
  }
  func.func @transform_2(%arg0: i32) -> (i32, i32) {
    %c0_i32 = arith.constant 0 : i32
    %c0_i32_0 = arith.constant 0 : i32
    %c0_i32_1 = arith.constant 0 : i32
    return %c0_i32, %c0_i32_0 : i32, i32
  }
  func.func @transform_3(%arg0: i32) -> (i32, i32) {
    %c0_i32 = arith.constant 0 : i32
    %c0_i32_0 = arith.constant 0 : i32
    return %arg0, %c0_i32 : i32, i32
  }
}

</mosaic_0001>

<llo_original>
// kernel: dino_forward.1
$region0: #{dino_forward.1}
  #allocation0 [shape = 'u32[]', space=smem, size = 0x4, offset = 0x4, fixed_abs, tag = 'smem constant byte address 0x4 - core index']
  #allocation1 [shape = 'u32[144,128]{1,0:T(1,128)}', space=vmem, size = 0x12000, scoped, tag = 'internal scratch']
  %s0 = inlined_call_operand.vmem [shape: bf16[8,8], index: 0, kind: input, shape index: {}]
  %s1 = inlined_call_operand.hbm [shape: bf16[4,128,128], index: 1, kind: input, shape index: {}]
  %s2 = inlined_call_operand.vmem [shape: f32[4,128], index: 2, kind: input, shape index: {}]
  %s3 = inlined_call_operand.vmem [shape: f32[8,128], index: 3, kind: output, shape index: {}]
  %s4 = sld [smem:[#allocation0]]
  $region26: #{dino_forward.1} parent=0
    _
  %s6 = ssub.s32 1, %s4
  %s7 = scalar_select 0, %s6, %s4
  $region1: #{dino_forward.1} parent=0
    #allocation2 [shape = 'u8[131072]{0}', space=vmem, size = 0x20000, scoped, tag = 'input window, operand 1, single buffered']
    #allocation3 [shape = 's32[1]{0}', space=sflag, size = 0x4, scoped, tag = 'scoped memory for dino_forward.1']
    %8 = vsyncpa [#allocation3], 0
    // Predicated region
    $region2: #{dino_forward.1} parent=1 // pred_check
      _
    $region3: #{dino_forward.1} parent=1 // pred_check_branch
      %10 = sbr.rel (0) target = $region5
    $region4: #{dino_forward.1} parent=1 // pred_region
      _
    $region5: #{dino_forward.1} parent=1 // pred_fallthru
      _
    // Predicated region
    $region6: #{dino_forward.1} parent=1 // pred_check
      _
    $region7: #{dino_forward.1} parent=1 // pred_check_branch
      %12 = sbr.rel (0) target = $region9
    $region8: #{dino_forward.1} parent=1 // pred_region
      %s14 = ssub.s32 4096, 4096
      %15 = vsyncadd [#allocation3], %s14
      %s16 = sshll.u32 [#allocation2], 4
      %s17 = int_to_ptr.vmem [resolvable:$true] %s16
      %22 = dma.hbm_to_vmem [thread:$0]  %s1, 4096, %s17, [#allocation3], 64, 64, 4
    $region9: #{dino_forward.1} parent=1 // pred_fallthru
      _
    // Predicated region
    $region10: #{dino_forward.1} parent=1 // pred_check
      _
    $region11: #{dino_forward.1} parent=1 // pred_check_branch
      %24 = sbr.rel (0) target = $region13
    $region12: #{dino_forward.1} parent=1 // pred_region
      _
    $region13: #{dino_forward.1} parent=1 // pred_fallthru
      _
    // Predicated region
    $region14: #{dino_forward.1} parent=1 // pred_check
      _
    $region15: #{dino_forward.1} parent=1 // pred_check_branch
      %26 = sbr.rel (0) target = $region17
    $region16: #{dino_forward.1} parent=1 // pred_region
      %27 = dma.done [#allocation3], 4096
    $region17: #{dino_forward.1} parent=1 // pred_fallthru
      _
    %v29 = vld [vmem:[%s2] sm:$0xf]
    %v30 = vld [vmem:[%s0] sm:$0xf]
    %v31 = vld [vmem:[#allocation2] sm:$0xf]
    %v32 = vlaneseq
    %v33 = vshrl.u32 %v32, 7
    %v34 = vsub.s32 0, %v33
    %v35 = vrot.slane %v29, %v34
    %vm36 = vcmask 64512
    %v38 = vsel %vm36, %v30, 0
    %vm40 = vcmask 1043456
    %v42 = vsel %vm40, %v31, 0
    %44 = vmatprep.subr.bf16.mxu0 0
    %45 = vmatpush1.bf16.msra.mxu0 0
    %46 = vmatprep.subr.bf16.mxu0 0
    %47 = vmatpush1.bf16.msra.mxu0 0
    %48 = vmatprep.subr.bf16.mxu0 0
    %49 = vmatpush1.bf16.msra.mxu0 0
    %50 = vmatprep.subr.bf16.mxu0 0
    %51 = vmatpush1.bf16.msra.mxu0 0
    %52 = vmatprep.subr.bf16.mxu0 0
    %53 = vmatpush1.bf16.msra.mxu0 0
    %54 = vmatprep.subr.bf16.mxu0 0
    %55 = vmatpush1.bf16.msra.mxu0 0
    %56 = vmatprep.subr.bf16.mxu0 0
    %57 = vmatpush1.bf16.msra.mxu0 0
    %58 = vmatprep.subr.bf16.mxu0 0
    %59 = vmatpush1.bf16.msra.mxu0 %v42
    %60 = vmatprep.subr.bf16.mxu0 0
    %61 = vmatpush2.bf16.msra.mxu0 0
    %62 = vmatprep.subr.bf16.mxu0 0
    %63 = vmatpush2.bf16.msra.mxu0 0
    %64 = vmatprep.subr.bf16.mxu0 0
    %65 = vmatpush2.bf16.msra.mxu0 0
    %66 = vmatprep.subr.bf16.mxu0 0
    %67 = vmatpush2.bf16.msra.mxu0 0
    %68 = vmatprep.subr.bf16.mxu0 0
    %69 = vmatpush2.bf16.msra.mxu0 0
    %70 = vmatprep.subr.bf16.mxu0 0
    %71 = vmatpush2.bf16.msra.mxu0 0
    %72 = vmatprep.subr.bf16.mxu0 0
    %73 = vmatpush2.bf16.msra.mxu0 0
    %74 = vmatprep.subr.bf16.mxu0 0
    %75 = vmatpush2.bf16.msra.mxu0 0
    %76 = vmatprep.mubr.bf16.mxu0 0
    %77 = vmatmul.mubr.bf16.gmra.mxu0 %v38
    %v78 = vpop.f32.mrf.mxu0
    %v79 = vadd.f32 %v35, %v78
    %v80 = vpop.f32.mrf.mxu0
    %v81 = vpop.f32.mrf.mxu0
    %v82 = vpop.f32.mrf.mxu0
    %83 = vdwg.mxu0
    %v84 = vmax.f32 %v79, 0.0
    %v85 = vpack.c.bf16 %v84, %v84
    %s86 = scalar_lea.vmem [#allocation2], 64
    %v87 = vld [vmem:[%s86] sm:$0xf]
    %v88 = vld [vmem:[%s86 + $0x4] sm:$0xf]
    %v89 = vld [vmem:[%s86 + $0x8] sm:$0xf]
    %v90 = vld [vmem:[%s86 + $0xc] sm:$0xf]
    %v91 = vld [vmem:[%s86 + $0x10] sm:$0xf]
    %v92 = vld [vmem:[%s86 + $0x14] sm:$0xf]
    %v93 = vld [vmem:[%s86 + $0x18] sm:$0xf]
    %v94 = vld [vmem:[%s86 + $0x1c] sm:$0xf]
    %v95 = vld [vmem:[%s86 + $0x20] sm:$0xf]
    %v96 = vld [vmem:[%s86 + $0x24] sm:$0xf]
    %v97 = vld [vmem:[%s86 + $0x28] sm:$0xf]
    %v98 = vld [vmem:[%s86 + $0x2c] sm:$0xf]
    %v99 = vld [vmem:[%s86 + $0x30] sm:$0xf]
    %v100 = vld [vmem:[%s86 + $0x34] sm:$0xf]
    %v101 = vld [vmem:[%s86 + $0x38] sm:$0xf]
    %v102 = vld [vmem:[%s86 + $0x3c] sm:$0xf]
    %v103 = vlaneseq
    %v104 = vshrl.u32 %v103, 7
    %v105 = vsub.s32 1, %v104
    %v106 = vrot.slane %v29, %v105
    %v123 = vunpack.c.l.b16 %v87
    %v124 = vunpack.c.l.b16 %v88
    %v125 = vunpack.c.l.b16 %v89
    %v126 = vunpack.c.l.b16 %v90
    %v127 = vunpack.c.l.b16 %v91
    %v128 = vunpack.c.l.b16 %v92
    %v129 = vunpack.c.l.b16 %v93
    %v130 = vunpack.c.l.b16 %v94
    %v131 = vunpack.c.l.b16 %v95
    %v132 = vunpack.c.l.b16 %v96
    %v133 = vunpack.c.l.b16 %v97
    %v134 = vunpack.c.l.b16 %v98
    %v135 = vunpack.c.l.b16 %v99
    %v136 = vunpack.c.l.b16 %v100
    %v137 = vunpack.c.l.b16 %v101
    %v138 = vunpack.c.l.b16 %v102
    %v139 = vpack.c.b16 %v124, %v123
    %v140 = vpack.c.b16 %v126, %v125
    %v141 = vpack.c.b16 %v128, %v127
    %v142 = vpack.c.b16 %v130, %v129
    %v143 = vpack.c.b16 %v132, %v131
    %v144 = vpack.c.b16 %v134, %v133
    %v145 = vpack.c.b16 %v136, %v135
    %v146 = vpack.c.b16 %v138, %v137
    %155 = vmatprep.subr.bf16.mxu0 0
    %156 = vmatpush1.bf16.msra.mxu0 %v146
    %157 = vmatprep.subr.bf16.mxu0 0
    %158 = vmatpush1.bf16.msra.mxu0 %v145
    %159 = vmatprep.subr.bf16.mxu0 0
    %160 = vmatpush1.bf16.msra.mxu0 %v144
    %161 = vmatprep.subr.bf16.mxu0 0
    %162 = vmatpush1.bf16.msra.mxu0 %v143
    %163 = vmatprep.subr.bf16.mxu0 0
    %164 = vmatpush1.bf16.msra.mxu0 %v142
    %165 = vmatprep.subr.bf16.mxu0 0
    %166 = vmatpush1.bf16.msra.mxu0 %v141
    %167 = vmatprep.subr.bf16.mxu0 0
    %168 = vmatpush1.bf16.msra.mxu0 %v140
    %169 = vmatprep.subr.bf16.mxu0 0
    %170 = vmatpush1.bf16.msra.mxu0 %v139
    %171 = vmatprep.subr.bf16.mxu0 0
    %172 = vmatpush2.bf16.msra.mxu0 0
    %173 = vmatprep.subr.bf16.mxu0 0
    %174 = vmatpush2.bf16.msra.mxu0 0
    %175 = vmatprep.subr.bf16.mxu0 0
    %176 = vmatpush2.bf16.msra.mxu0 0
    %177 = vmatprep.subr.bf16.mxu0 0
    %178 = vmatpush2.bf16.msra.mxu0 0
    %179 = vmatprep.subr.bf16.mxu0 0
    %180 = vmatpush2.bf16.msra.mxu0 0
    %181 = vmatprep.subr.bf16.mxu0 0
    %182 = vmatpush2.bf16.msra.mxu0 0
    %183 = vmatprep.subr.bf16.mxu0 0
    %184 = vmatpush2.bf16.msra.mxu0 0
    %185 = vmatprep.subr.bf16.mxu0 0
    %186 = vmatpush2.bf16.msra.mxu0 0
    %187 = vmatprep.mubr.bf16.mxu0 0
    %188 = vmatmul.mubr.bf16.gmra.mxu0 %v85
    %v189 = vpop.f32.mrf.mxu0
    %v190 = vadd.f32 %v106, %v189
    %v191 = vpop.f32.mrf.mxu0
    %v192 = vpop.f32.mrf.mxu0
    %v193 = vpop.f32.mrf.mxu0
    %194 = vdwg.mxu0
    %v195 = vmax.f32 %v190, 0.0
    %v196 = vpack.c.bf16 %v195, %v195
    %s197 = scalar_lea.vmem [#allocation2], 128
    %v198 = vld [vmem:[%s197] sm:$0xf]
    %v199 = vld [vmem:[%s197 + $0x4] sm:$0xf]
    %v200 = vld [vmem:[%s197 + $0x8] sm:$0xf]
    %v201 = vld [vmem:[%s197 + $0xc] sm:$0xf]
    %v202 = vld [vmem:[%s197 + $0x10] sm:$0xf]
    %v203 = vld [vmem:[%s197 + $0x14] sm:$0xf]
    %v204 = vld [vmem:[%s197 + $0x18] sm:$0xf]
    %v205 = vld [vmem:[%s197 + $0x1c] sm:$0xf]
    %v206 = vld [vmem:[%s197 + $0x20] sm:$0xf]
    %v207 = vld [vmem:[%s197 + $0x24] sm:$0xf]
    %v208 = vld [vmem:[%s197 + $0x28] sm:$0xf]
    %v209 = vld [vmem:[%s197 + $0x2c] sm:$0xf]
    %v210 = vld [vmem:[%s197 + $0x30] sm:$0xf]
    %v211 = vld [vmem:[%s197 + $0x34] sm:$0xf]
    %v212 = vld [vmem:[%s197 + $0x38] sm:$0xf]
    %v213 = vld [vmem:[%s197 + $0x3c] sm:$0xf]
    %v214 = vlaneseq
    %v215 = vshrl.u32 %v214, 7
    %v216 = vsub.s32 2, %v215
    %v217 = vrot.slane %v29, %v216
    %v234 = vunpack.c.l.b16 %v198
    %v235 = vunpack.c.l.b16 %v199
    %v236 = vunpack.c.l.b16 %v200
    %v237 = vunpack.c.l.b16 %v201
    %v238 = vunpack.c.l.b16 %v202
    %v239 = vunpack.c.l.b16 %v203
    %v240 = vunpack.c.l.b16 %v204
    %v241 = vunpack.c.l.b16 %v205
    %v242 = vunpack.c.l.b16 %v206
    %v243 = vunpack.c.l.b16 %v207
    %v244 = vunpack.c.l.b16 %v208
    %v245 = vunpack.c.l.b16 %v209
    %v246 = vunpack.c.l.b16 %v210
    %v247 = vunpack.c.l.b16 %v211
    %v248 = vunpack.c.l.b16 %v212
    %v249 = vunpack.c.l.b16 %v213
    %v250 = vpack.c.b16 %v235, %v234
    %v251 = vpack.c.b16 %v237, %v236
    %v252 = vpack.c.b16 %v239, %v238
    %v253 = vpack.c.b16 %v241, %v240
    %v254 = vpack.c.b16 %v243, %v242
    %v255 = vpack.c.b16 %v245, %v244
    %v256 = vpack.c.b16 %v247, %v246
    %v257 = vpack.c.b16 %v249, %v248
    %266 = vmatprep.subr.bf16.mxu0 0
    %267 = vmatpush1.bf16.msra.mxu0 %v257
    %268 = vmatprep.subr.bf16.mxu0 0
    %269 = vmatpush1.bf16.msra.mxu0 %v256
    %270 = vmatprep.subr.bf16.mxu0 0
    %271 = vmatpush1.bf16.msra.mxu0 %v255
    %272 = vmatprep.subr.bf16.mxu0 0
    %273 = vmatpush1.bf16.msra.mxu0 %v254
    %274 = vmatprep.subr.bf16.mxu0 0
    %275 = vmatpush1.bf16.msra.mxu0 %v253
    %276 = vmatprep.subr.bf16.mxu0 0
    %277 = vmatpush1.bf16.msra.mxu0 %v252
    %278 = vmatprep.subr.bf16.mxu0 0
    %279 = vmatpush1.bf16.msra.mxu0 %v251
    %280 = vmatprep.subr.bf16.mxu0 0
    %281 = vmatpush1.bf16.msra.mxu0 %v250
    %282 = vmatprep.subr.bf16.mxu0 0
    %283 = vmatpush2.bf16.msra.mxu0 0
    %284 = vmatprep.subr.bf16.mxu0 0
    %285 = vmatpush2.bf16.msra.mxu0 0
    %286 = vmatprep.subr.bf16.mxu0 0
    %287 = vmatpush2.bf16.msra.mxu0 0
    %288 = vmatprep.subr.bf16.mxu0 0
    %289 = vmatpush2.bf16.msra.mxu0 0
    %290 = vmatprep.subr.bf16.mxu0 0
    %291 = vmatpush2.bf16.msra.mxu0 0
    %292 = vmatprep.subr.bf16.mxu0 0
    %293 = vmatpush2.bf16.msra.mxu0 0
    %294 = vmatprep.subr.bf16.mxu0 0
    %295 = vmatpush2.bf16.msra.mxu0 0
    %296 = vmatprep.subr.bf16.mxu0 0
    %297 = vmatpush2.bf16.msra.mxu0 0
    %298 = vmatprep.mubr.bf16.mxu0 0
    %299 = vmatmul.mubr.bf16.gmra.mxu0 %v196
    %v300 = vpop.f32.mrf.mxu0
    %v301 = vadd.f32 %v217, %v300
    %v302 = vpop.f32.mrf.mxu0
    %v303 = vpop.f32.mrf.mxu0
    %v304 = vpop.f32.mrf.mxu0
    %305 = vdwg.mxu0
    %v306 = vmax.f32 %v301, 0.0
    %v307 = vpack.c.bf16 %v306, %v306
    %s308 = scalar_lea.vmem [#allocation2], 192
    %v309 = vld [vmem:[%s308] sm:$0xf]
    %v310 = vld [vmem:[%s308 + $0x4] sm:$0xf]
    %v311 = vld [vmem:[%s308 + $0x8] sm:$0xf]
    %v312 = vld [vmem:[%s308 + $0xc] sm:$0xf]
    %v313 = vld [vmem:[%s308 + $0x10] sm:$0xf]
    %v314 = vld [vmem:[%s308 + $0x14] sm:$0xf]
    %v315 = vld [vmem:[%s308 + $0x18] sm:$0xf]
    %v316 = vld [vmem:[%s308 + $0x1c] sm:$0xf]
    %v317 = vld [vmem:[%s308 + $0x20] sm:$0xf]
    %v318 = vld [vmem:[%s308 + $0x24] sm:$0xf]
    %v319 = vld [vmem:[%s308 + $0x28] sm:$0xf]
    %v320 = vld [vmem:[%s308 + $0x2c] sm:$0xf]
    %v321 = vld [vmem:[%s308 + $0x30] sm:$0xf]
    %v322 = vld [vmem:[%s308 + $0x34] sm:$0xf]
    %v323 = vld [vmem:[%s308 + $0x38] sm:$0xf]
    %v324 = vld [vmem:[%s308 + $0x3c] sm:$0xf]
    %v325 = vlaneseq
    %v326 = vshrl.u32 %v325, 7
    %v327 = vsub.s32 3, %v326
    %v328 = vrot.slane %v29, %v327
    %v345 = vunpack.c.l.b16 %v309
    %v346 = vunpack.c.l.b16 %v310
    %v347 = vunpack.c.l.b16 %v311
    %v348 = vunpack.c.l.b16 %v312
    %v349 = vunpack.c.l.b16 %v313
    %v350 = vunpack.c.l.b16 %v314
    %v351 = vunpack.c.l.b16 %v315
    %v352 = vunpack.c.l.b16 %v316
    %v353 = vunpack.c.l.b16 %v317
    %v354 = vunpack.c.l.b16 %v318
    %v355 = vunpack.c.l.b16 %v319
    %v356 = vunpack.c.l.b16 %v320
    %v357 = vunpack.c.l.b16 %v321
    %v358 = vunpack.c.l.b16 %v322
    %v359 = vunpack.c.l.b16 %v323
    %v360 = vunpack.c.l.b16 %v324
    %v361 = vpack.c.b16 %v346, %v345
    %v362 = vpack.c.b16 %v348, %v347
    %v363 = vpack.c.b16 %v350, %v349
    %v364 = vpack.c.b16 %v352, %v351
    %v365 = vpack.c.b16 %v354, %v353
    %v366 = vpack.c.b16 %v356, %v355
    %v367 = vpack.c.b16 %v358, %v357
    %v368 = vpack.c.b16 %v360, %v359
    %377 = vmatprep.subr.bf16.mxu0 0
    %378 = vmatpush1.bf16.msra.mxu0 %v368
    %379 = vmatprep.subr.bf16.mxu0 0
    %380 = vmatpush1.bf16.msra.mxu0 %v367
    %381 = vmatprep.subr.bf16.mxu0 0
    %382 = vmatpush1.bf16.msra.mxu0 %v366
    %383 = vmatprep.subr.bf16.mxu0 0
    %384 = vmatpush1.bf16.msra.mxu0 %v365
    %385 = vmatprep.subr.bf16.mxu0 0
    %386 = vmatpush1.bf16.msra.mxu0 %v364
    %387 = vmatprep.subr.bf16.mxu0 0
    %388 = vmatpush1.bf16.msra.mxu0 %v363
    %389 = vmatprep.subr.bf16.mxu0 0
    %390 = vmatpush1.bf16.msra.mxu0 %v362
    %391 = vmatprep.subr.bf16.mxu0 0
    %392 = vmatpush1.bf16.msra.mxu0 %v361
    %393 = vmatprep.subr.bf16.mxu0 0
    %394 = vmatpush2.bf16.msra.mxu0 0
    %395 = vmatprep.subr.bf16.mxu0 0
    %396 = vmatpush2.bf16.msra.mxu0 0
    %397 = vmatprep.subr.bf16.mxu0 0
    %398 = vmatpush2.bf16.msra.mxu0 0
    %399 = vmatprep.subr.bf16.mxu0 0
    %400 = vmatpush2.bf16.msra.mxu0 0
    %401 = vmatprep.subr.bf16.mxu0 0
    %402 = vmatpush2.bf16.msra.mxu0 0
    %403 = vmatprep.subr.bf16.mxu0 0
    %404 = vmatpush2.bf16.msra.mxu0 0
    %405 = vmatprep.subr.bf16.mxu0 0
    %406 = vmatpush2.bf16.msra.mxu0 0
    %407 = vmatprep.subr.bf16.mxu0 0
    %408 = vmatpush2.bf16.msra.mxu0 0
    %409 = vmatprep.mubr.bf16.mxu0 0
    %410 = vmatmul.mubr.bf16.gmra.mxu0 %v307
    %v411 = vpop.f32.mrf.mxu0
    %v412 = vadd.f32 %v328, %v411
    %v413 = vpop.f32.mrf.mxu0
    %v414 = vpop.f32.mrf.mxu0
    %v415 = vpop.f32.mrf.mxu0
    %416 = vdwg.mxu0
    %417 = vst [vmem:[%s3] sm:$0xff] %v412
    // Predicated region
    $region18: #{dino_forward.1} parent=1 // pred_check
      _
    $region19: #{dino_forward.1} parent=1 // pred_check_branch
      %419 = sbr.rel (0) target = $region21
    $region20: #{dino_forward.1} parent=1 // pred_region
      _
    $region21: #{dino_forward.1} parent=1 // pred_fallthru
      _
    // Predicated region
    $region22: #{dino_forward.1} parent=1 // pred_check
      _
    $region23: #{dino_forward.1} parent=1 // pred_check_branch
      %421 = sbr.rel (0) target = $region25
    $region24: #{dino_forward.1} parent=1 // pred_region
      _
    $region25: #{dino_forward.1} parent=1 // pred_fallthru
      _
    %422 = vsyncpa [#allocation3], 1

</llo_original>
